<compile_context>
chip_gen: v5e
topology: v5e:2x2
jax: 0.10.0
libtpu: 0.0.40
codegen_flags: <defaults>
</compile_context>

<pallas_src>
import jax
import jax.numpy as jnp
from jax import lax
from jax.experimental import pallas as pl
from jax.experimental.pallas import tpu as pltpu

LEAKY_ALPHA = 0.2
NEG_BIG = -9e15
NORM_EPS = 1e-12
NHID = 16        # fixed by the module: GAT(nfeat=dims[0], nhid=16, nclass=dims[0], ...)
NHID_PAD = 128   # lane-dense padding of the hidden width


def _gat_attention_layer(inp, w, c, mask):
    """One pyGAT GraphAttentionLayer (single head) followed by ELU.

    inp : (N, Din)   layer input
    w   : (Din, Dout_pad)  weight (zero-padded on Dout)
    c   : (2, Din)   folded attention vectors  c[0] = W@a_src, c[1] = W@a_dst
    mask: (N, N)     bool adjacency mask (adj > 0), hoisted by the caller
    """
    # wh and the two score projections are all functions of `inp` only, so the
    # MXU can issue them back-to-back without waiting on each other's results.
    wh = jnp.dot(inp, w, preferred_element_type=jnp.float32)                 # (N, Dout_pad)
    e_i = lax.dot_general(inp, c[0:1, :], (((1,), (1,)), ((), ())),
                          preferred_element_type=jnp.float32)                # (N, 1)
    e_j = lax.dot_general(c[1:2, :], inp, (((1,), (1,)), ((), ())),
                          preferred_element_type=jnp.float32)                # (1, N) - no transpose
    e = e_i + e_j                                                            # (N, N)
    e = jnp.where(e > 0, e, LEAKY_ALPHA * e)                                 # LeakyReLU(0.2)
    e = jnp.where(mask, e, NEG_BIG)                                          # adjacency mask
    # softmax over neighbors (axis=1) — exact division for PyTorch fidelity
    m = jnp.max(e, axis=1, keepdims=True)
    p = jnp.exp(e - m)
    att = p / jnp.sum(p, axis=1, keepdims=True)
    h = jnp.dot(att, wh, preferred_element_type=jnp.float32)                 # (N, Dout_pad)
    # ELU(alpha=1); clamp the exp argument so large positive h can't overflow
    return jnp.where(h > 0, h, jnp.exp(jnp.minimum(h, 0.0)) - 1.0)


def _fused_model_kernel(x_ref, adj_ref, w1_ref, c1_ref, w2_ref, c2_ref, out_ref):
    """Both GAT stacks in one body: layer1+ELU -> layer2+ELU -> log_softmax(dim=1)
    -> L2 normalize(dim=1).  Static 2-way unroll lets the scheduler interleave
    the two independent stacks on a single TensorCore."""
    x = x_ref[...]
    mask = adj_ref[...] > 0.0          # hoisted: shared by both layers of both stacks
    for g in range(2):                 # static unroll over the two GAT stacks
        h1 = _gat_attention_layer(x, w1_ref[g], c1_ref[g], mask)   # (N, NHID_PAD)
        h2 = _gat_attention_layer(h1, w2_ref[g], c2_ref[g], mask)  # (N, nfeat)
        # log_softmax over features (GAT.forward)
        m = jnp.max(h2, axis=1, keepdims=True)
        z = h2 - m
        ls = z - jnp.log(jnp.sum(jnp.exp(z), axis=1, keepdims=True))
        # F.normalize(dim=1, p=2): x / max(||x||, eps) == x * rsqrt(max(||x||^2, eps^2))
        inv_norm = lax.rsqrt(jnp.maximum(jnp.sum(ls * ls, axis=1, keepdims=True),
                                         NORM_EPS * NORM_EPS))
        out_ref[g] = ls * inv_norm


@jax.jit
def my_model_forward(x, adj, kp):
    n, nfeat = x.shape
    nhid_pad = kp["W1"].shape[-1]
    out = pl.pallas_call(
        _fused_model_kernel,
        out_shape=jax.ShapeDtypeStruct((2, n, nfeat), jnp.float32),
        grid=(1,),                                                   # single step, both stacks
        in_specs=[
            pl.BlockSpec((n, nfeat), lambda i: (0, 0)),              # x (shared)
            pl.BlockSpec((n, n), lambda i: (0, 0)),                  # adj (shared)
            pl.BlockSpec((2, nfeat, nhid_pad), lambda i: (0, 0, 0)),  # W1 (both stacks)
            pl.BlockSpec((2, 2, nfeat), lambda i: (0, 0, 0)),         # c1 = W1@a1_{src,dst}
            pl.BlockSpec((2, nhid_pad, nfeat), lambda i: (0, 0, 0)),  # W2 (both stacks)
            pl.BlockSpec((2, 2, nhid_pad), lambda i: (0, 0, 0)),      # c2 = W2@a2_{src,dst}
        ],
        out_specs=pl.BlockSpec((2, n, nfeat), lambda i: (0, 0, 0)),
        compiler_params=pltpu.CompilerParams(
            dimension_semantics=("arbitrary",),
        ),
    )(x, adj, kp["W1"], kp["c1"], kp["W2"], kp["c2"])
    return out[0], out[1]


# --------------------------------------------------------------------------
# Deterministic parameter construction (xavier_uniform, gain=1.414 like pyGAT)
# and host-side precompute: fold attention vectors, pad nhid to 128.
# --------------------------------------------------------------------------
def _xavier_uniform(key, shape, gain=1.414):
    fan_in, fan_out = shape[0], shape[1]
    bound = gain * (6.0 / (fan_in + fan_out)) ** 0.5
    return jax.random.uniform(key, shape, jnp.float32, -bound, bound)


def make_gat_params(key, nfeat, nhid, nclass):
    k1, k2, k3, k4 = jax.random.split(key, 4)
    return {
        "W1": _xavier_uniform(k1, (nfeat, nhid)),
        "a1": _xavier_uniform(k2, (2 * nhid, 1)),
        "W2": _xavier_uniform(k3, (nhid, nclass)),
        "a2": _xavier_uniform(k4, (2 * nclass, 1)),
    }


def prepare_kernel_params(p, nhid_pad=NHID_PAD):
    """Fold a-vectors into the layer input (c = W @ a_{src,dst}) and zero-pad
    the nhid dimension so every intermediate is lane-dense."""
    nfeat, nhid = p["W1"].shape
    nclass = p["W2"].shape[1]
    # layer 1: c1[0] = W1 @ a1[:nhid], c1[1] = W1 @ a1[nhid:]   -> (2, nfeat)
    c1 = jnp.stack([p["W1"] @ p["a1"][:nhid, 0], p["W1"] @ p["a1"][nhid:, 0]], axis=0)
    # layer 2: c2[0] = W2 @ a2[:nclass], c2[1] = W2 @ a2[nclass:] -> (2, nhid) -> pad
    c2_small = jnp.stack([p["W2"] @ p["a2"][:nclass, 0], p["W2"] @ p["a2"][nclass:, 0]], axis=0)
    W1p = jnp.zeros((nfeat, nhid_pad), jnp.float32).at[:, :nhid].set(p["W1"])
    W2p = jnp.zeros((nhid_pad, nclass), jnp.float32).at[:nhid, :].set(p["W2"])
    c2 = jnp.zeros((2, nhid_pad), jnp.float32).at[:, :nhid].set(c2_small)
    return {"W1": W1p, "c1": c1, "W2": W2p, "c2": c2}


def stack_kernel_params(p1, p2):
    return {k: jnp.stack([p1[k], p2[k]], axis=0) for k in p1}


# --------------------------------------------------------------------------
if __name__ == "__main__":
    # module shapes: dims[0] = nfeat = nclass (128 -> lane-dense output),
    # nhid = 16 and nheads = 1 are fixed inside my_model.
    N_NODES = 8
    NFEAT = 128
    # TODO(synk): dropout (p=0.3) and the unused lin1/lin2/bn layers are omitted
    # (inference-mode no-ops / never called in forward()).

    key = jax.random.PRNGKey(0)
    kx, kadj, kp1, kp2 = jax.random.split(key, 4)

    x = jax.random.normal(kx, (N_NODES, NFEAT), jnp.float32)

    # random binary adjacency with self-loops
    adj = (jax.random.uniform(kadj, (N_NODES, N_NODES)) < 0.4).astype(jnp.float32)
    adj = jnp.maximum(adj, jnp.eye(N_NODES, dtype=jnp.float32))

    raw1 = make_gat_params(kp1, NFEAT, NHID, NFEAT)
    raw2 = make_gat_params(kp2, NFEAT, NHID, NFEAT)
    kparams = stack_kernel_params(prepare_kernel_params(raw1), prepare_kernel_params(raw2))

    out1, out2 = my_model_forward(x, adj, kparams)
    jax.block_until_ready((out1, out2))

    assert out1.shape == (N_NODES, NFEAT) and out2.shape == (N_NODES, NFEAT)
    assert bool(jnp.isfinite(out1).all()) and bool(jnp.isfinite(out2).all())
    print("KERNEL_OK")
</pallas_src>

<mosaic_0001>
module attributes {stable_mosaic.version = 11 : i64} {
  func.func @_fused_model_kernel(%arg0: i32, %arg1: memref<8x128xf32, #tpu.memory_space<vmem>>, %arg2: memref<8x8xf32, #tpu.memory_space<vmem>>, %arg3: memref<2x128x128xf32, #tpu.memory_space<vmem>>, %arg4: memref<2x2x128xf32, #tpu.memory_space<vmem>>, %arg5: memref<2x128x128xf32, #tpu.memory_space<vmem>>, %arg6: memref<2x2x128xf32, #tpu.memory_space<vmem>>, %arg7: memref<2x8x128xf32, #tpu.memory_space<vmem>>) attributes {dimension_semantics = [#tpu.dimension_semantics<arbitrary>], iteration_bounds = array<i64: 1>, scalar_prefetch = 0 : i64, scratch_operands = 0 : i64, tpu.core_type = #tpu.core_type<tc>, window_params = [{pipeline_mode = #tpu.pipeline_mode<synchronous>, transform_indices = @transform_0, window_bounds = array<i64: 8, 128>}, {pipeline_mode = #tpu.pipeline_mode<synchronous>, transform_indices = @transform_1, window_bounds = array<i64: 8, 8>}, {pipeline_mode = #tpu.pipeline_mode<synchronous>, transform_indices = @transform_2, window_bounds = array<i64: 2, 128, 128>}, {pipeline_mode = #tpu.pipeline_mode<synchronous>, transform_indices = @transform_3, window_bounds = array<i64: 2, 2, 128>}, {pipeline_mode = #tpu.pipeline_mode<synchronous>, transform_indices = @transform_4, window_bounds = array<i64: 2, 128, 128>}, {pipeline_mode = #tpu.pipeline_mode<synchronous>, transform_indices = @transform_5, window_bounds = array<i64: 2, 2, 128>}, {pipeline_mode = #tpu.pipeline_mode<synchronous>, transform_indices = @transform_6, window_bounds = array<i64: 2, 8, 128>}]} {
    %c0 = arith.constant 0 : index
    %c0_0 = arith.constant 0 : index
    %0 = vector.load %arg1[%c0, %c0_0] : memref<8x128xf32, #tpu.memory_space<vmem>>, vector<8x128xf32>
    %c0_1 = arith.constant 0 : index
    %c0_2 = arith.constant 0 : index
    %1 = vector.load %arg2[%c0_1, %c0_2] : memref<8x8xf32, #tpu.memory_space<vmem>>, vector<8x8xf32>
    %cst = arith.constant 0.000000e+00 : f32
    %2 = vector.broadcast %cst : f32 to vector<8x8xf32>
    %3 = arith.cmpf ogt, %1, %2 : vector<8x8xf32>
    %c0_3 = arith.constant 0 : index
    %c0_4 = arith.constant 0 : index
    %c0_5 = arith.constant 0 : index
    %4 = vector.load %arg3[%c0_3, %c0_4, %c0_5] : memref<2x128x128xf32, #tpu.memory_space<vmem>>, vector<1x128x128xf32>
    %5 = vector.shape_cast %4 : vector<1x128x128xf32> to vector<128x128xf32>
    %c0_6 = arith.constant 0 : index
    %c0_7 = arith.constant 0 : index
    %c0_8 = arith.constant 0 : index
    %6 = vector.load %arg4[%c0_6, %c0_7, %c0_8] : memref<2x2x128xf32, #tpu.memory_space<vmem>>, vector<1x2x128xf32>
    %7 = vector.shape_cast %6 : vector<1x2x128xf32> to vector<2x128xf32>
    %cst_9 = arith.constant dense<0.000000e+00> : vector<8x128xf32>
    %8 = tpu.matmul %0, %5, %cst_9 {dimension_numbers = #tpu.dot_dimension_numbers<[1], [0], [0], [1], [0, 0, 1, 1], [], []>} : vector<8x128xf32>, vector<128x128xf32>, vector<8x128xf32> -> vector<8x128xf32>
    %9 = vector.extract_strided_slice %7 {offsets = [0, 0], sizes = [1, 128], strides = [1, 1]} : vector<2x128xf32> to vector<1x128xf32>
    %cst_10 = arith.constant dense<0.000000e+00> : vector<8x1xf32>
    %10 = tpu.matmul %0, %9, %cst_10 {dimension_numbers = #tpu.dot_dimension_numbers<[1], [1], [0], [0], [0, 0, 1, 0], [], []>} : vector<8x128xf32>, vector<1x128xf32>, vector<8x1xf32> -> vector<8x1xf32>
    %11 = vector.extract_strided_slice %7 {offsets = [1, 0], sizes = [1, 128], strides = [1, 1]} : vector<2x128xf32> to vector<1x128xf32>
    %cst_11 = arith.constant dense<0.000000e+00> : vector<1x8xf32>
    %12 = tpu.matmul %11, %0, %cst_11 {dimension_numbers = #tpu.dot_dimension_numbers<[1], [1], [0], [0], [0, 0, 1, 0], [], []>} : vector<1x128xf32>, vector<8x128xf32>, vector<1x8xf32> -> vector<1x8xf32>
    %13 = vector.broadcast %10 : vector<8x1xf32> to vector<8x8xf32>
    %14 = vector.broadcast %12 : vector<1x8xf32> to vector<8x8xf32>
    %15 = arith.addf %13, %14 : vector<8x8xf32>
    %cst_12 = arith.constant 0.000000e+00 : f32
    %16 = vector.broadcast %cst_12 : f32 to vector<8x8xf32>
    %17 = arith.cmpf ogt, %15, %16 : vector<8x8xf32>
    %cst_13 = arith.constant 2.000000e-01 : f32
    %18 = vector.broadcast %cst_13 : f32 to vector<8x8xf32>
    %19 = arith.mulf %18, %15 : vector<8x8xf32>
    %20 = arith.select %17, %15, %19 : vector<8x8xi1>, vector<8x8xf32>
    %cst_14 = arith.constant -9.000000e+15 : f32
    %21 = vector.broadcast %cst_14 : f32 to vector<8x8xf32>
    %22 = arith.select %3, %20, %21 : vector<8x8xi1>, vector<8x8xf32>
    %cst_15 = arith.constant dense<0xFF800000> : vector<8xf32>
    %23 = vector.multi_reduction <maximumf>, %22, %cst_15 [1] : vector<8x8xf32> to vector<8xf32>
    %24 = vector.shape_cast %23 : vector<8xf32> to vector<8x1xf32>
    %25 = vector.broadcast %24 : vector<8x1xf32> to vector<8x8xf32>
    %26 = arith.subf %22, %25 : vector<8x8xf32>
    %27 = math.exp %26 : vector<8x8xf32>
    %cst_16 = arith.constant dense<0.000000e+00> : vector<8xf32>
    %28 = vector.multi_reduction <add>, %27, %cst_16 [1] : vector<8x8xf32> to vector<8xf32>
    %29 = vector.shape_cast %28 : vector<8xf32> to vector<8x1xf32>
    %30 = vector.broadcast %29 : vector<8x1xf32> to vector<8x8xf32>
    %31 = arith.divf %27, %30 : vector<8x8xf32>
    %cst_17 = arith.constant dense<0.000000e+00> : vector<8x128xf32>
    %32 = tpu.matmul %31, %8, %cst_17 {dimension_numbers = #tpu.dot_dimension_numbers<[1], [0], [0], [1], [0, 0, 1, 1], [], []>} : vector<8x8xf32>, vector<8x128xf32>, vector<8x128xf32> -> vector<8x128xf32>
    %cst_18 = arith.constant 0.000000e+00 : f32
    %33 = vector.broadcast %cst_18 : f32 to vector<8x128xf32>
    %34 = arith.cmpf ogt, %32, %33 : vector<8x128xf32>
    %cst_19 = arith.constant 0.000000e+00 : f32
    %35 = vector.broadcast %cst_19 : f32 to vector<8x128xf32>
    %36 = arith.minimumf %32, %35 : vector<8x128xf32>
    %37 = math.exp %36 : vector<8x128xf32>
    %cst_20 = arith.constant 1.000000e+00 : f32
    %38 = vector.broadcast %cst_20 : f32 to vector<8x128xf32>
    %39 = arith.subf %37, %38 : vector<8x128xf32>
    %40 = arith.select %34, %32, %39 : vector<8x128xi1>, vector<8x128xf32>
    %c0_21 = arith.constant 0 : index
    %c0_22 = arith.constant 0 : index
    %c0_23 = arith.constant 0 : index
    %41 = vector.load %arg5[%c0_21, %c0_22, %c0_23] : memref<2x128x128xf32, #tpu.memory_space<vmem>>, vector<1x128x128xf32>
    %42 = vector.shape_cast %41 : vector<1x128x128xf32> to vector<128x128xf32>
    %c0_24 = arith.constant 0 : index
    %c0_25 = arith.constant 0 : index
    %c0_26 = arith.constant 0 : index
    %43 = vector.load %arg6[%c0_24, %c0_25, %c0_26] : memref<2x2x128xf32, #tpu.memory_space<vmem>>, vector<1x2x128xf32>
    %44 = vector.shape_cast %43 : vector<1x2x128xf32> to vector<2x128xf32>
    %cst_27 = arith.constant dense<0.000000e+00> : vector<8x128xf32>
    %45 = tpu.matmul %40, %42, %cst_27 {dimension_numbers = #tpu.dot_dimension_numbers<[1], [0], [0], [1], [0, 0, 1, 1], [], []>} : vector<8x128xf32>, vector<128x128xf32>, vector<8x128xf32> -> vector<8x128xf32>
    %46 = vector.extract_strided_slice %44 {offsets = [0, 0], sizes = [1, 128], strides = [1, 1]} : vector<2x128xf32> to vector<1x128xf32>
    %cst_28 = arith.constant dense<0.000000e+00> : vector<8x1xf32>
    %47 = tpu.matmul %40, %46, %cst_28 {dimension_numbers = #tpu.dot_dimension_numbers<[1], [1], [0], [0], [0, 0, 1, 0], [], []>} : vector<8x128xf32>, vector<1x128xf32>, vector<8x1xf32> -> vector<8x1xf32>
    %48 = vector.extract_strided_slice %44 {offsets = [1, 0], sizes = [1, 128], strides = [1, 1]} : vector<2x128xf32> to vector<1x128xf32>
    %cst_29 = arith.constant dense<0.000000e+00> : vector<1x8xf32>
    %49 = tpu.matmul %48, %40, %cst_29 {dimension_numbers = #tpu.dot_dimension_numbers<[1], [1], [0], [0], [0, 0, 1, 0], [], []>} : vector<1x128xf32>, vector<8x128xf32>, vector<1x8xf32> -> vector<1x8xf32>
    %50 = vector.broadcast %47 : vector<8x1xf32> to vector<8x8xf32>
    %51 = vector.broadcast %49 : vector<1x8xf32> to vector<8x8xf32>
    %52 = arith.addf %50, %51 : vector<8x8xf32>
    %cst_30 = arith.constant 0.000000e+00 : f32
    %53 = vector.broadcast %cst_30 : f32 to vector<8x8xf32>
    %54 = arith.cmpf ogt, %52, %53 : vector<8x8xf32>
    %cst_31 = arith.constant 2.000000e-01 : f32
    %55 = vector.broadcast %cst_31 : f32 to vector<8x8xf32>
    %56 = arith.mulf %55, %52 : vector<8x8xf32>
    %57 = arith.select %54, %52, %56 : vector<8x8xi1>, vector<8x8xf32>
    %cst_32 = arith.constant -9.000000e+15 : f32
    %58 = vector.broadcast %cst_32 : f32 to vector<8x8xf32>
    %59 = arith.select %3, %57, %58 : vector<8x8xi1>, vector<8x8xf32>
    %cst_33 = arith.constant dense<0xFF800000> : vector<8xf32>
    %60 = vector.multi_reduction <maximumf>, %59, %cst_33 [1] : vector<8x8xf32> to vector<8xf32>
    %61 = vector.shape_cast %60 : vector<8xf32> to vector<8x1xf32>
    %62 = vector.broadcast %61 : vector<8x1xf32> to vector<8x8xf32>
    %63 = arith.subf %59, %62 : vector<8x8xf32>
    %64 = math.exp %63 : vector<8x8xf32>
    %cst_34 = arith.constant dense<0.000000e+00> : vector<8xf32>
    %65 = vector.multi_reduction <add>, %64, %cst_34 [1] : vector<8x8xf32> to vector<8xf32>
    %66 = vector.shape_cast %65 : vector<8xf32> to vector<8x1xf32>
    %67 = vector.broadcast %66 : vector<8x1xf32> to vector<8x8xf32>
    %68 = arith.divf %64, %67 : vector<8x8xf32>
    %cst_35 = arith.constant dense<0.000000e+00> : vector<8x128xf32>
    %69 = tpu.matmul %68, %45, %cst_35 {dimension_numbers = #tpu.dot_dimension_numbers<[1], [0], [0], [1], [0, 0, 1, 1], [], []>} : vector<8x8xf32>, vector<8x128xf32>, vector<8x128xf32> -> vector<8x128xf32>
    %cst_36 = arith.constant 0.000000e+00 : f32
    %70 = vector.broadcast %cst_36 : f32 to vector<8x128xf32>
    %71 = arith.cmpf ogt, %69, %70 : vector<8x128xf32>
    %cst_37 = arith.constant 0.000000e+00 : f32
    %72 = vector.broadcast %cst_37 : f32 to vector<8x128xf32>
    %73 = arith.minimumf %69, %72 : vector<8x128xf32>
    %74 = math.exp %73 : vector<8x128xf32>
    %cst_38 = arith.constant 1.000000e+00 : f32
    %75 = vector.broadcast %cst_38 : f32 to vector<8x128xf32>
    %76 = arith.subf %74, %75 : vector<8x128xf32>
    %77 = arith.select %71, %69, %76 : vector<8x128xi1>, vector<8x128xf32>
    %cst_39 = arith.constant dense<0xFF800000> : vector<8xf32>
    %78 = vector.multi_reduction <maximumf>, %77, %cst_39 [1] : vector<8x128xf32> to vector<8xf32>
    %79 = vector.shape_cast %78 : vector<8xf32> to vector<8x1xf32>
    %80 = vector.broadcast %79 : vector<8x1xf32> to vector<8x128xf32>
    %81 = arith.subf %77, %80 : vector<8x128xf32>
    %82 = math.exp %81 : vector<8x128xf32>
    %cst_40 = arith.constant dense<0.000000e+00> : vector<8xf32>
    %83 = vector.multi_reduction <add>, %82, %cst_40 [1] : vector<8x128xf32> to vector<8xf32>
    %84 = vector.shape_cast %83 : vector<8xf32> to vector<8x1xf32>
    %85 = math.log %84 : vector<8x1xf32>
    %86 = vector.broadcast %85 : vector<8x1xf32> to vector<8x128xf32>
    %87 = arith.subf %81, %86 : vector<8x128xf32>
    %88 = arith.mulf %87, %87 : vector<8x128xf32>
    %cst_41 = arith.constant dense<0.000000e+00> : vector<8xf32>
    %89 = vector.multi_reduction <add>, %88, %cst_41 [1] : vector<8x128xf32> to vector<8xf32>
    %90 = vector.shape_cast %89 : vector<8xf32> to vector<8x1xf32>
    %cst_42 = arith.constant 1.000000e-24 : f32
    %91 = vector.broadcast %cst_42 : f32 to vector<8x1xf32>
    %92 = arith.maximumf %90, %91 : vector<8x1xf32>
    %93 = math.rsqrt %92 : vector<8x1xf32>
    %94 = vector.broadcast %93 : vector<8x1xf32> to vector<8x128xf32>
    %95 = arith.mulf %87, %94 : vector<8x128xf32>
    %c0_43 = arith.constant 0 : index
    %c0_44 = arith.constant 0 : index
    %c0_45 = arith.constant 0 : index
    %96 = vector.load %arg7[%c0_43, %c0_44, %c0_45] : memref<2x8x128xf32, #tpu.memory_space<vmem>>, vector<1x8x128xf32>
    %97 = vector.shape_cast %96 : vector<1x8x128xf32> to vector<8x128xf32>
    %98 = vector.shape_cast %95 : vector<8x128xf32> to vector<1x8x128xf32>
    tpu.vector_store %arg7[%c0_43, %c0_44, %c0_45], %98 {strides = array<i32>} : memref<2x8x128xf32, #tpu.memory_space<vmem>>, vector<1x8x128xf32>,
    %c1 = arith.constant 1 : index
    %c0_46 = arith.constant 0 : index
    %c0_47 = arith.constant 0 : index
    %99 = vector.load %arg3[%c1, %c0_46, %c0_47] : memref<2x128x128xf32, #tpu.memory_space<vmem>>, vector<1x128x128xf32>
    %100 = vector.shape_cast %99 : vector<1x128x128xf32> to vector<128x128xf32>
    %c1_48 = arith.constant 1 : index
    %c0_49 = arith.constant 0 : index
    %c0_50 = arith.constant 0 : index
    %101 = vector.load %arg4[%c1_48, %c0_49, %c0_50] : memref<2x2x128xf32, #tpu.memory_space<vmem>>, vector<1x2x128xf32>
    %102 = vector.shape_cast %101 : vector<1x2x128xf32> to vector<2x128xf32>
    %cst_51 = arith.constant dense<0.000000e+00> : vector<8x128xf32>
    %103 = tpu.matmul %0, %100, %cst_51 {dimension_numbers = #tpu.dot_dimension_numbers<[1], [0], [0], [1], [0, 0, 1, 1], [], []>} : vector<8x128xf32>, vector<128x128xf32>, vector<8x128xf32> -> vector<8x128xf32>
    %104 = vector.extract_strided_slice %102 {offsets = [0, 0], sizes = [1, 128], strides = [1, 1]} : vector<2x128xf32> to vector<1x128xf32>
    %cst_52 = arith.constant dense<0.000000e+00> : vector<8x1xf32>
    %105 = tpu.matmul %0, %104, %cst_52 {dimension_numbers = #tpu.dot_dimension_numbers<[1], [1], [0], [0], [0, 0, 1, 0], [], []>} : vector<8x128xf32>, vector<1x128xf32>, vector<8x1xf32> -> vector<8x1xf32>
    %106 = vector.extract_strided_slice %102 {offsets = [1, 0], sizes = [1, 128], strides = [1, 1]} : vector<2x128xf32> to vector<1x128xf32>
    %cst_53 = arith.constant dense<0.000000e+00> : vector<1x8xf32>
    %107 = tpu.matmul %106, %0, %cst_53 {dimension_numbers = #tpu.dot_dimension_numbers<[1], [1], [0], [0], [0, 0, 1, 0], [], []>} : vector<1x128xf32>, vector<8x128xf32>, vector<1x8xf32> -> vector<1x8xf32>
    %108 = vector.broadcast %105 : vector<8x1xf32> to vector<8x8xf32>
    %109 = vector.broadcast %107 : vector<1x8xf32> to vector<8x8xf32>
    %110 = arith.addf %108, %109 : vector<8x8xf32>
    %cst_54 = arith.constant 0.000000e+00 : f32
    %111 = vector.broadcast %cst_54 : f32 to vector<8x8xf32>
    %112 = arith.cmpf ogt, %110, %111 : vector<8x8xf32>
    %cst_55 = arith.constant 2.000000e-01 : f32
    %113 = vector.broadcast %cst_55 : f32 to vector<8x8xf32>
    %114 = arith.mulf %113, %110 : vector<8x8xf32>
    %115 = arith.select %112, %110, %114 : vector<8x8xi1>, vector<8x8xf32>
    %cst_56 = arith.constant -9.000000e+15 : f32
    %116 = vector.broadcast %cst_56 : f32 to vector<8x8xf32>
    %117 = arith.select %3, %115, %116 : vector<8x8xi1>, vector<8x8xf32>
    %cst_57 = arith.constant dense<0xFF800000> : vector<8xf32>
    %118 = vector.multi_reduction <maximumf>, %117, %cst_57 [1] : vector<8x8xf32> to vector<8xf32>
    %119 = vector.shape_cast %118 : vector<8xf32> to vector<8x1xf32>
    %120 = vector.broadcast %119 : vector<8x1xf32> to vector<8x8xf32>
    %121 = arith.subf %117, %120 : vector<8x8xf32>
    %122 = math.exp %121 : vector<8x8xf32>
    %cst_58 = arith.constant dense<0.000000e+00> : vector<8xf32>
    %123 = vector.multi_reduction <add>, %122, %cst_58 [1] : vector<8x8xf32> to vector<8xf32>
    %124 = vector.shape_cast %123 : vector<8xf32> to vector<8x1xf32>
    %125 = vector.broadcast %124 : vector<8x1xf32> to vector<8x8xf32>
    %126 = arith.divf %122, %125 : vector<8x8xf32>
    %cst_59 = arith.constant dense<0.000000e+00> : vector<8x128xf32>
    %127 = tpu.matmul %126, %103, %cst_59 {dimension_numbers = #tpu.dot_dimension_numbers<[1], [0], [0], [1], [0, 0, 1, 1], [], []>} : vector<8x8xf32>, vector<8x128xf32>, vector<8x128xf32> -> vector<8x128xf32>
    %cst_60 = arith.constant 0.000000e+00 : f32
    %128 = vector.broadcast %cst_60 : f32 to vector<8x128xf32>
    %129 = arith.cmpf ogt, %127, %128 : vector<8x128xf32>
    %cst_61 = arith.constant 0.000000e+00 : f32
    %130 = vector.broadcast %cst_61 : f32 to vector<8x128xf32>
    %131 = arith.minimumf %127, %130 : vector<8x128xf32>
    %132 = math.exp %131 : vector<8x128xf32>
    %cst_62 = arith.constant 1.000000e+00 : f32
    %133 = vector.broadcast %cst_62 : f32 to vector<8x128xf32>
    %134 = arith.subf %132, %133 : vector<8x128xf32>
    %135 = arith.select %129, %127, %134 : vector<8x128xi1>, vector<8x128xf32>
    %c1_63 = arith.constant 1 : index
    %c0_64 = arith.constant 0 : index
    %c0_65 = arith.constant 0 : index
    %136 = vector.load %arg5[%c1_63, %c0_64, %c0_65] : memref<2x128x128xf32, #tpu.memory_space<vmem>>, vector<1x128x128xf32>
    %137 = vector.shape_cast %136 : vector<1x128x128xf32> to vector<128x128xf32>
    %c1_66 = arith.constant 1 : index
    %c0_67 = arith.constant 0 : index
    %c0_68 = arith.constant 0 : index
    %138 = vector.load %arg6[%c1_66, %c0_67, %c0_68] : memref<2x2x128xf32, #tpu.memory_space<vmem>>, vector<1x2x128xf32>
    %139 = vector.shape_cast %138 : vector<1x2x128xf32> to vector<2x128xf32>
    %cst_69 = arith.constant dense<0.000000e+00> : vector<8x128xf32>
    %140 = tpu.matmul %135, %137, %cst_69 {dimension_numbers = #tpu.dot_dimension_numbers<[1], [0], [0], [1], [0, 0, 1, 1], [], []>} : vector<8x128xf32>, vector<128x128xf32>, vector<8x128xf32> -> vector<8x128xf32>
    %141 = vector.extract_strided_slice %139 {offsets = [0, 0], sizes = [1, 128], strides = [1, 1]} : vector<2x128xf32> to vector<1x128xf32>
    %cst_70 = arith.constant dense<0.000000e+00> : vector<8x1xf32>
    %142 = tpu.matmul %135, %141, %cst_70 {dimension_numbers = #tpu.dot_dimension_numbers<[1], [1], [0], [0], [0, 0, 1, 0], [], []>} : vector<8x128xf32>, vector<1x128xf32>, vector<8x1xf32> -> vector<8x1xf32>
    %143 = vector.extract_strided_slice %139 {offsets = [1, 0], sizes = [1, 128], strides = [1, 1]} : vector<2x128xf32> to vector<1x128xf32>
    %cst_71 = arith.constant dense<0.000000e+00> : vector<1x8xf32>
    %144 = tpu.matmul %143, %135, %cst_71 {dimension_numbers = #tpu.dot_dimension_numbers<[1], [1], [0], [0], [0, 0, 1, 0], [], []>} : vector<1x128xf32>, vector<8x128xf32>, vector<1x8xf32> -> vector<1x8xf32>
    %145 = vector.broadcast %142 : vector<8x1xf32> to vector<8x8xf32>
    %146 = vector.broadcast %144 : vector<1x8xf32> to vector<8x8xf32>
    %147 = arith.addf %145, %146 : vector<8x8xf32>
    %cst_72 = arith.constant 0.000000e+00 : f32
    %148 = vector.broadcast %cst_72 : f32 to vector<8x8xf32>
    %149 = arith.cmpf ogt, %147, %148 : vector<8x8xf32>
    %cst_73 = arith.constant 2.000000e-01 : f32
    %150 = vector.broadcast %cst_73 : f32 to vector<8x8xf32>
    %151 = arith.mulf %150, %147 : vector<8x8xf32>
    %152 = arith.select %149, %147, %151 : vector<8x8xi1>, vector<8x8xf32>
    %cst_74 = arith.constant -9.000000e+15 : f32
    %153 = vector.broadcast %cst_74 : f32 to vector<8x8xf32>
    %154 = arith.select %3, %152, %153 : vector<8x8xi1>, vector<8x8xf32>
    %cst_75 = arith.constant dense<0xFF800000> : vector<8xf32>
    %155 = vector.multi_reduction <maximumf>, %154, %cst_75 [1] : vector<8x8xf32> to vector<8xf32>
    %156 = vector.shape_cast %155 : vector<8xf32> to vector<8x1xf32>
    %157 = vector.broadcast %156 : vector<8x1xf32> to vector<8x8xf32>
    %158 = arith.subf %154, %157 : vector<8x8xf32>
    %159 = math.exp %158 : vector<8x8xf32>
    %cst_76 = arith.constant dense<0.000000e+00> : vector<8xf32>
    %160 = vector.multi_reduction <add>, %159, %cst_76 [1] : vector<8x8xf32> to vector<8xf32>
    %161 = vector.shape_cast %160 : vector<8xf32> to vector<8x1xf32>
    %162 = vector.broadcast %161 : vector<8x1xf32> to vector<8x8xf32>
    %163 = arith.divf %159, %162 : vector<8x8xf32>
    %cst_77 = arith.constant dense<0.000000e+00> : vector<8x128xf32>
    %164 = tpu.matmul %163, %140, %cst_77 {dimension_numbers = #tpu.dot_dimension_numbers<[1], [0], [0], [1], [0, 0, 1, 1], [], []>} : vector<8x8xf32>, vector<8x128xf32>, vector<8x128xf32> -> vector<8x128xf32>
    %cst_78 = arith.constant 0.000000e+00 : f32
    %165 = vector.broadcast %cst_78 : f32 to vector<8x128xf32>
    %166 = arith.cmpf ogt, %164, %165 : vector<8x128xf32>
    %cst_79 = arith.constant 0.000000e+00 : f32
    %167 = vector.broadcast %cst_79 : f32 to vector<8x128xf32>
    %168 = arith.minimumf %164, %167 : vector<8x128xf32>
    %169 = math.exp %168 : vector<8x128xf32>
    %cst_80 = arith.constant 1.000000e+00 : f32
    %170 = vector.broadcast %cst_80 : f32 to vector<8x128xf32>
    %171 = arith.subf %169, %170 : vector<8x128xf32>
    %172 = arith.select %166, %164, %171 : vector<8x128xi1>, vector<8x128xf32>
    %cst_81 = arith.constant dense<0xFF800000> : vector<8xf32>
    %173 = vector.multi_reduction <maximumf>, %172, %cst_81 [1] : vector<8x128xf32> to vector<8xf32>
    %174 = vector.shape_cast %173 : vector<8xf32> to vector<8x1xf32>
    %175 = vector.broadcast %174 : vector<8x1xf32> to vector<8x128xf32>
    %176 = arith.subf %172, %175 : vector<8x128xf32>
    %177 = math.exp %176 : vector<8x128xf32>
    %cst_82 = arith.constant dense<0.000000e+00> : vector<8xf32>
    %178 = vector.multi_reduction <add>, %177, %cst_82 [1] : vector<8x128xf32> to vector<8xf32>
    %179 = vector.shape_cast %178 : vector<8xf32> to vector<8x1xf32>
    %180 = math.log %179 : vector<8x1xf32>
    %181 = vector.broadcast %180 : vector<8x1xf32> to vector<8x128xf32>
    %182 = arith.subf %176, %181 : vector<8x128xf32>
    %183 = arith.mulf %182, %182 : vector<8x128xf32>
    %cst_83 = arith.constant dense<0.000000e+00> : vector<8xf32>
    %184 = vector.multi_reduction <add>, %183, %cst_83 [1] : vector<8x128xf32> to vector<8xf32>
    %185 = vector.shape_cast %184 : vector<8xf32> to vector<8x1xf32>
    %cst_84 = arith.constant 1.000000e-24 : f32
    %186 = vector.broadcast %cst_84 : f32 to vector<8x1xf32>
    %187 = arith.maximumf %185, %186 : vector<8x1xf32>
    %188 = math.rsqrt %187 : vector<8x1xf32>
    %189 = vector.broadcast %188 : vector<8x1xf32> to vector<8x128xf32>
    %190 = arith.mulf %182, %189 : vector<8x128xf32>
    %c1_85 = arith.constant 1 : index
    %c0_86 = arith.constant 0 : index
    %c0_87 = arith.constant 0 : index
    %191 = vector.load %arg7[%c1_85, %c0_86, %c0_87] : memref<2x8x128xf32, #tpu.memory_space<vmem>>, vector<1x8x128xf32>
    %192 = vector.shape_cast %191 : vector<1x8x128xf32> to vector<8x128xf32>
    %193 = vector.shape_cast %190 : vector<8x128xf32> to vector<1x8x128xf32>
    tpu.vector_store %arg7[%c1_85, %c0_86, %c0_87], %193 {strides = array<i32>} : memref<2x8x128xf32, #tpu.memory_space<vmem>>, vector<1x8x128xf32>,
    return
  }
  func.func @transform_0(%arg0: i32) -> (i32, i32) {
    %c0_i32 = arith.constant 0 : i32
    %c0_i32_0 = arith.constant 0 : i32
    %c0_i32_1 = arith.constant 0 : i32
    return %c0_i32, %c0_i32_0 : i32, i32
  }
  func.func @transform_1(%arg0: i32) -> (i32, i32) {
    %c0_i32 = arith.constant 0 : i32
    %c0_i32_0 = arith.constant 0 : i32
    %c0_i32_1 = arith.constant 0 : i32
    return %c0_i32, %c0_i32_0 : i32, i32
  }
  func.func @transform_2(%arg0: i32) -> (i32, i32, i32) {
    %c0_i32 = arith.constant 0 : i32
    %c0_i32_0 = arith.constant 0 : i32
    %c0_i32_1 = arith.constant 0 : i32
    %c0_i32_2 = arith.constant 0 : i32
    return %c0_i32, %c0_i32_0, %c0_i32_1 : i32, i32, i32
  }
  func.func @transform_3(%arg0: i32) -> (i32, i32, i32) {
    %c0_i32 = arith.constant 0 : i32
    %c0_i32_0 = arith.constant 0 : i32
    %c0_i32_1 = arith.constant 0 : i32
    %c0_i32_2 = arith.constant 0 : i32
    return %c0_i32, %c0_i32_0, %c0_i32_1 : i32, i32, i32
  }
  func.func @transform_4(%arg0: i32) -> (i32, i32, i32) {
    %c0_i32 = arith.constant 0 : i32
    %c0_i32_0 = arith.constant 0 : i32
    %c0_i32_1 = arith.constant 0 : i32
    %c0_i32_2 = arith.constant 0 : i32
    return %c0_i32, %c0_i32_0, %c0_i32_1 : i32, i32, i32
  }
  func.func @transform_5(%arg0: i32) -> (i32, i32, i32) {
    %c0_i32 = arith.constant 0 : i32
    %c0_i32_0 = arith.constant 0 : i32
    %c0_i32_1 = arith.constant 0 : i32
    %c0_i32_2 = arith.constant 0 : i32
    return %c0_i32, %c0_i32_0, %c0_i32_1 : i32, i32, i32
  }
  func.func @transform_6(%arg0: i32) -> (i32, i32, i32) {
    %c0_i32 = arith.constant 0 : i32
    %c0_i32_0 = arith.constant 0 : i32
    %c0_i32_1 = arith.constant 0 : i32
    %c0_i32_2 = arith.constant 0 : i32
    return %c0_i32, %c0_i32_0, %c0_i32_1 : i32, i32, i32
  }
}

</mosaic_0001>

<llo_original>
// kernel: my_model_forward.1
$region0: #{my_model_forward.1}
  #allocation0 [shape = 'u32[]', space=smem, size = 0x4, offset = 0x4, fixed_abs, tag = 'smem constant byte address 0x4 - core index']
  #allocation1 [shape = 'u32[72,128]{1,0:T(1,128)}', space=vmem, size = 0x9000, scoped, tag = 'internal scratch']
  %s0 = inlined_call_operand.hbm [shape: f32[8,128], index: 0, kind: input, shape index: {}]
  %s1 = inlined_call_operand.hbm [shape: f32[8,8], index: 1, kind: input, shape index: {}]
  %s2 = inlined_call_operand.hbm [shape: f32[2,128,128], index: 2, kind: input, shape index: {}]
  %s3 = inlined_call_operand.hbm [shape: f32[2,2,128], index: 3, kind: input, shape index: {}]
  %s4 = inlined_call_operand.hbm [shape: f32[2,128,128], index: 4, kind: input, shape index: {}]
  %s5 = inlined_call_operand.vmem [shape: f32[2,2,128], index: 5, kind: input, shape index: {}]
  %s6 = inlined_call_operand.vmem [shape: f32[2,8,128], index: 6, kind: output, shape index: {}]
  %s7 = sld [smem:[#allocation0]]
  $region54: #{my_model_forward.1} parent=0
    _
  %s9 = ssub.s32 1, %s7
  %s10 = scalar_select 0, %s9, %s7
  $region1: #{my_model_forward.1} parent=0
    #allocation2 [shape = 'u8[4096]{0}', space=vmem, size = 0x1000, scoped, tag = 'input window, operand 0, single buffered']
    #allocation3 [shape = 's32[1]{0}', space=sflag, size = 0x4, scoped, tag = 'scoped memory for my_model_forward.1']
    #allocation4 [shape = 'u8[4096]{0}', space=vmem, size = 0x1000, scoped, tag = 'input window, operand 1, single buffered']
    #allocation5 [shape = 's32[1]{0}', space=sflag, size = 0x4, scoped, tag = 'scoped memory for my_model_forward.1']
    #allocation6 [shape = 'u8[131072]{0}', space=vmem, size = 0x20000, scoped, tag = 'input window, operand 2, single buffered']
    #allocation7 [shape = 'u8[2048]{0}', space=vmem, size = 0x800, scoped, tag = 'input window, operand 3, single buffered']
    #allocation8 [shape = 's32[1]{0}', space=sflag, size = 0x4, scoped, tag = 'scoped memory for my_model_forward.1']
    #allocation9 [shape = 'u8[131072]{0}', space=vmem, size = 0x20000, scoped, tag = 'input window, operand 4, single buffered']
    %11 = vsyncpa [#allocation3], 0
    %12 = vsyncpa [#allocation5], 0
    %13 = vsyncpa [#allocation8], 0
    // Predicated region
    $region2: #{my_model_forward.1} parent=1 // pred_check
      _
    $region3: #{my_model_forward.1} parent=1 // pred_check_branch
      %15 = sbr.rel (0) target = $region5
    $region4: #{my_model_forward.1} parent=1 // pred_region
      %17 = vsyncadd [#allocation3], 0
      %s19 = sshll.u32 %s0, 4
      %s20 = int_to_ptr.hbm [resolvable:$true] %s19
      %s21 = sshll.u32 [#allocation2], 4
      %s22 = int_to_ptr.vmem [resolvable:$true] %s21
      %24 = dma.hbm_to_vmem [thread:$0]  %s20, 128, %s22, [#allocation3]
    $region5: #{my_model_forward.1} parent=1 // pred_fallthru
      _
    // Predicated region
    $region6: #{my_model_forward.1} parent=1 // pred_check
      _
    $region7: #{my_model_forward.1} parent=1 // pred_check_branch
      %26 = sbr.rel (0) target = $region9
    $region8: #{my_model_forward.1} parent=1 // pred_region
      %28 = vsyncadd [#allocation5], 0
      %s30 = sshll.u32 %s1, 4
      %s31 = int_to_ptr.hbm [resolvable:$true] %s30
      %s32 = sshll.u32 [#allocation4], 4
      %s33 = int_to_ptr.vmem [resolvable:$true] %s32
      %35 = dma.hbm_to_vmem [thread:$0]  %s31, 128, %s33, [#allocation5]
    $region9: #{my_model_forward.1} parent=1 // pred_fallthru
      _
    // Predicated region
    $region10: #{my_model_forward.1} parent=1 // pred_check
      _
    $region11: #{my_model_forward.1} parent=1 // pred_check_branch
      %37 = sbr.rel (0) target = $region13
    $region12: #{my_model_forward.1} parent=1 // pred_region
      %39 = vsyncadd [#allocation5], 0
      %s40 = sshll.u32 %s2, 4
      %s41 = int_to_ptr.hbm [resolvable:$true] %s40
      %s42 = sshll.u32 [#allocation6], 4
      %s43 = int_to_ptr.vmem [resolvable:$true] %s42
      %48 = dma.hbm_to_vmem [thread:$0]  %s41, 4096, %s43, [#allocation5], 128, 128, 8
    $region13: #{my_model_forward.1} parent=1 // pred_fallthru
      _
    // Predicated region
    $region14: #{my_model_forward.1} parent=1 // pred_check
      _
    $region15: #{my_model_forward.1} parent=1 // pred_check_branch
      %50 = sbr.rel (0) target = $region17
    $region16: #{my_model_forward.1} parent=1 // pred_region
      %52 = vsyncadd [#allocation8], 0
      %s53 = sshll.u32 %s3, 4
      %s54 = int_to_ptr.hbm [resolvable:$true] %s53
      %s55 = sshll.u32 [#allocation7], 4
      %s56 = int_to_ptr.vmem [resolvable:$true] %s55
      %61 = dma.hbm_to_vmem [thread:$0]  %s54, 64, %s56, [#allocation8], 32, 32, 2
    $region17: #{my_model_forward.1} parent=1 // pred_fallthru
      _
    // Predicated region
    $region18: #{my_model_forward.1} parent=1 // pred_check
      _
    $region19: #{my_model_forward.1} parent=1 // pred_check_branch
      %63 = sbr.rel (0) target = $region21
    $region20: #{my_model_forward.1} parent=1 // pred_region
      %65 = vsyncadd [#allocation8], 0
      %s66 = sshll.u32 %s4, 4
      %s67 = int_to_ptr.hbm [resolvable:$true] %s66
      %s68 = sshll.u32 [#allocation9], 4
      %s69 = int_to_ptr.vmem [resolvable:$true] %s68
      %74 = dma.hbm_to_vmem [thread:$0]  %s67, 4096, %s69, [#allocation8], 128, 128, 8
    $region21: #{my_model_forward.1} parent=1 // pred_fallthru
      _
    // Predicated region
    $region22: #{my_model_forward.1} parent=1 // pred_check
      _
    $region23: #{my_model_forward.1} parent=1 // pred_check_branch
      %76 = sbr.rel (0) target = $region25
    $region24: #{my_model_forward.1} parent=1 // pred_region
      _
    $region25: #{my_model_forward.1} parent=1 // pred_fallthru
      _
    // Predicated region
    $region26: #{my_model_forward.1} parent=1 // pred_check
      _
    $region27: #{my_model_forward.1} parent=1 // pred_check_branch
      %78 = sbr.rel (0) target = $region29
    $region28: #{my_model_forward.1} parent=1 // pred_region
      %80 = dma.done [#allocation3], 128
    $region29: #{my_model_forward.1} parent=1 // pred_fallthru
      _
    // Predicated region
    $region30: #{my_model_forward.1} parent=1 // pred_check
      _
    $region31: #{my_model_forward.1} parent=1 // pred_check_branch
      %82 = sbr.rel (0) target = $region33
    $region32: #{my_model_forward.1} parent=1 // pred_region
      %84 = dma.done [#allocation5], 128
    $region33: #{my_model_forward.1} parent=1 // pred_fallthru
      _
    // Predicated region
    $region34: #{my_model_forward.1} parent=1 // pred_check
      _
    $region35: #{my_model_forward.1} parent=1 // pred_check_branch
      %86 = sbr.rel (0) target = $region37
    $region36: #{my_model_forward.1} parent=1 // pred_region
      %88 = dma.done [#allocation5], 4096
    $region37: #{my_model_forward.1} parent=1 // pred_fallthru
      _
    // Predicated region
    $region38: #{my_model_forward.1} parent=1 // pred_check
      _
    $region39: #{my_model_forward.1} parent=1 // pred_check_branch
      %90 = sbr.rel (0) target = $region41
    $region40: #{my_model_forward.1} parent=1 // pred_region
      %92 = dma.done [#allocation8], 64
    $region41: #{my_model_forward.1} parent=1 // pred_fallthru
      _
    // Predicated region
    $region42: #{my_model_forward.1} parent=1 // pred_check
      _
    $region43: #{my_model_forward.1} parent=1 // pred_check_branch
      %94 = sbr.rel (0) target = $region45
    $region44: #{my_model_forward.1} parent=1 // pred_region
      %96 = dma.done [#allocation8], 4096
    $region45: #{my_model_forward.1} parent=1 // pred_fallthru
      _
    %v97 = vld [vmem:[#allocation2] sm:$0xff]
    %v98 = vld [vmem:[#allocation4] sm:$0xff]
    %vm99 = vcmp.gt.f32.partialorder %v98, 0.0
    %v100 = vld [vmem:[#allocation6] sm:$0xff]
    %v101 = vld [vmem:[#allocation6 + $0x8] sm:$0xff]
    %v102 = vld [vmem:[#allocation6 + $0x10] sm:$0xff]
    %v103 = vld [vmem:[#allocation6 + $0x18] sm:$0xff]
    %v104 = vld [vmem:[#allocation6 + $0x20] sm:$0xff]
    %v105 = vld [vmem:[#allocation6 + $0x28] sm:$0xff]
    %v106 = vld [vmem:[#allocation6 + $0x30] sm:$0xff]
    %v107 = vld [vmem:[#allocation6 + $0x38] sm:$0xff]
    %v108 = vld [vmem:[#allocation6 + $0x40] sm:$0xff]
    %v109 = vld [vmem:[#allocation6 + $0x48] sm:$0xff]
    %v110 = vld [vmem:[#allocation6 + $0x50] sm:$0xff]
    %v111 = vld [vmem:[#allocation6 + $0x58] sm:$0xff]
    %v112 = vld [vmem:[#allocation6 + $0x60] sm:$0xff]
    %v113 = vld [vmem:[#allocation6 + $0x68] sm:$0xff]
    %v114 = vld [vmem:[#allocation6 + $0x70] sm:$0xff]
    %v115 = vld [vmem:[#allocation6 + $0x78] sm:$0xff]
    %v116 = vld [vmem:[#allocation7] sm:$0x3]
    %117 = vmatpush.msra.mxu0 %v115
    %118 = vmatpush.msra.mxu0 %v114
    %119 = vmatpush.msra.mxu0 %v113
    %120 = vmatpush.msra.mxu0 %v112
    %121 = vmatpush.msra.mxu0 %v111
    %122 = vmatpush.msra.mxu0 %v110
    %123 = vmatpush.msra.mxu0 %v109
    %124 = vmatpush.msra.mxu0 %v108
    %125 = vmatpush.msra.mxu0 %v107
    %126 = vmatpush.msra.mxu0 %v106
    %127 = vmatpush.msra.mxu0 %v105
    %128 = vmatpush.msra.mxu0 %v104
    %129 = vmatpush.msra.mxu0 %v103
    %130 = vmatpush.msra.mxu0 %v102
    %131 = vmatpush.msra.mxu0 %v101
    %132 = vmatpush.msra.mxu0 %v100
    %133 = vmatmul.f32.gmra.mxu0 %v97
    %v134 = vpop.f32.mrf.mxu0
    %v135 = vadd.f32 0.0, %v134
    %136 = vdwg.mxu0
    %v137 = vperm.slane %v116, 0
    %v138 = vmul.f32 %v97, %v137
    %139 = vadd.xlane.f32.xlu0 %v138
    %v140 = vpop.xlane.xlu0 %139
    %v142 = vrot.slane %v116, 1
    %144 = vmatpush.xpose.msra.mxu0 0.0
    %145 = vmatpush.xpose.msra.mxu0 0.0
    %146 = vmatpush.xpose.msra.mxu0 0.0
    %147 = vmatpush.xpose.msra.mxu0 0.0
    %148 = vmatpush.xpose.msra.mxu0 0.0
    %149 = vmatpush.xpose.msra.mxu0 0.0
    %150 = vmatpush.xpose.msra.mxu0 0.0
    %151 = vmatpush.xpose.msra.mxu0 0.0
    %152 = vmatpush.xpose.msra.mxu0 0.0
    %153 = vmatpush.xpose.msra.mxu0 0.0
    %154 = vmatpush.xpose.msra.mxu0 0.0
    %155 = vmatpush.xpose.msra.mxu0 0.0
    %156 = vmatpush.xpose.msra.mxu0 0.0
    %157 = vmatpush.xpose.msra.mxu0 0.0
    %158 = vmatpush.xpose.msra.mxu0 0.0
    %159 = vmatpush.xpose.msra.mxu0 %v97
    %160 = vmatmul.f32.gmra.mxu0 %v142
    %v161 = vpop.f32.mrf.mxu0
    %v162 = vadd.f32 0.0, %v161
    %163 = vdwg.mxu0
    %v164 = vperm.slane %v162, 0
    %v165 = vadd.f32 %v140, %v164
    %vm166 = vcmp.gt.f32.partialorder %v165, 0.0
    %v167 = vmul.f32 %v165, 0.2
    %v168 = vsel %vm166, %v165, %v167
    %v169 = vsel %vm99, %v168, -9e+15
    %vm170 = vcmask 64512
    %v171 = vsel %vm170, %v169, -inf
    %172 = vmax.xlane.f32.xlu0 %v171
    %v173 = vpop.xlane.xlu0 %172
    %v174 = vsub.f32 %v169, %v173
    %v175 = vmul.f32 %v174, 1.442695
    %v176 = vpow.pop %v175
    %v177 = vsel %vm170, %v176, 0.0
    %178 = vadd.xlane.f32.xlu0 %v177
    %v179 = vpop.xlane.xlu0 %178
    %v180 = vrcp.pop %v179
    %v181 = vmul.f32 %v179, %v180
    %v182 = vsub.f32 1.0, %v181
    %v183 = vmul.f32 %v180, %v182
    %v184 = vadd.f32 %v180, %v183
    %vm185 = vweird.f32 %v179
    %vm186 = vweird.f32 %v180
    %vm187 = vmor %vm185, %vm186
    %v188 = vsel %vm187, %v180, %v184
    %v189 = vand.u32 2147483647, %v179
    %vm190 = vcmp.eq.f32.partialorder %v189, 8.507059e+37
    %v191 = vand.u32 %v179, 2147483648
    %v192 = vor.u32 1.1754944e-38, %v191
    %v193 = vsel %vm190, %v192, %v188
    %v194 = vmul.f32 %v176, %v193
    %v196 = vsel %vm170, %v194, 0
    %198 = vmatpush.msra.mxu0 0.0
    %199 = vmatpush.msra.mxu0 0.0
    %200 = vmatpush.msra.mxu0 0.0
    %201 = vmatpush.msra.mxu0 0.0
    %202 = vmatpush.msra.mxu0 0.0
    %203 = vmatpush.msra.mxu0 0.0
    %204 = vmatpush.msra.mxu0 0.0
    %205 = vmatpush.msra.mxu0 0.0
    %206 = vmatpush.msra.mxu0 0.0
    %207 = vmatpush.msra.mxu0 0.0
    %208 = vmatpush.msra.mxu0 0.0
    %209 = vmatpush.msra.mxu0 0.0
    %210 = vmatpush.msra.mxu0 0.0
    %211 = vmatpush.msra.mxu0 0.0
    %212 = vmatpush.msra.mxu0 0.0
    %213 = vmatpush.msra.mxu0 %v135
    %214 = vmatmul.f32.gmra.mxu0 %v196
    %v215 = vpop.f32.mrf.mxu0
    %v216 = vadd.f32 0.0, %v215
    %217 = vdwg.mxu0
    %vm218 = vcmp.gt.f32.partialorder %v216, 0.0
    %v219 = vmin.f32 %v216, 0.0
    %v220 = vmul.f32 %v219, 1.442695
    %v221 = vpow.pop %v220
    %v222 = vsub.f32 %v221, 1.0
    %v223 = vsel %vm218, %v216, %v222
    %v224 = vld [vmem:[#allocation9] sm:$0xff]
    %v225 = vld [vmem:[#allocation9 + $0x8] sm:$0xff]
    %v226 = vld [vmem:[#allocation9 + $0x10] sm:$0xff]
    %v227 = vld [vmem:[#allocation9 + $0x18] sm:$0xff]
    %v228 = vld [vmem:[#allocation9 + $0x20] sm:$0xff]
    %v229 = vld [vmem:[#allocation9 + $0x28] sm:$0xff]
    %v230 = vld [vmem:[#allocation9 + $0x30] sm:$0xff]
    %v231 = vld [vmem:[#allocation9 + $0x38] sm:$0xff]
    %v232 = vld [vmem:[#allocation9 + $0x40] sm:$0xff]
    %v233 = vld [vmem:[#allocation9 + $0x48] sm:$0xff]
    %v234 = vld [vmem:[#allocation9 + $0x50] sm:$0xff]
    %v235 = vld [vmem:[#allocation9 + $0x58] sm:$0xff]
    %v236 = vld [vmem:[#allocation9 + $0x60] sm:$0xff]
    %v237 = vld [vmem:[#allocation9 + $0x68] sm:$0xff]
    %v238 = vld [vmem:[#allocation9 + $0x70] sm:$0xff]
    %v239 = vld [vmem:[#allocation9 + $0x78] sm:$0xff]
    %v240 = vld [vmem:[%s5] sm:$0x3]
    %241 = vmatpush.msra.mxu0 %v239
    %242 = vmatpush.msra.mxu0 %v238
    %243 = vmatpush.msra.mxu0 %v237
    %244 = vmatpush.msra.mxu0 %v236
    %245 = vmatpush.msra.mxu0 %v235
    %246 = vmatpush.msra.mxu0 %v234
    %247 = vmatpush.msra.mxu0 %v233
    %248 = vmatpush.msra.mxu0 %v232
    %249 = vmatpush.msra.mxu0 %v231
    %250 = vmatpush.msra.mxu0 %v230
    %251 = vmatpush.msra.mxu0 %v229
    %252 = vmatpush.msra.mxu0 %v228
    %253 = vmatpush.msra.mxu0 %v227
    %254 = vmatpush.msra.mxu0 %v226
    %255 = vmatpush.msra.mxu0 %v225
    %256 = vmatpush.msra.mxu0 %v224
    %257 = vmatmul.f32.gmra.mxu0 %v223
    %v258 = vpop.f32.mrf.mxu0
    %v259 = vadd.f32 0.0, %v258
    %260 = vdwg.mxu0
    %v261 = vperm.slane %v240, 0
    %v262 = vmul.f32 %v223, %v261
    %263 = vadd.xlane.f32.xlu0 %v262
    %v264 = vpop.xlane.xlu0 %263
    %v266 = vrot.slane %v240, 1
    %268 = vmatpush.xpose.msra.mxu0 0.0
    %269 = vmatpush.xpose.msra.mxu0 0.0
    %270 = vmatpush.xpose.msra.mxu0 0.0
    %271 = vmatpush.xpose.msra.mxu0 0.0
    %272 = vmatpush.xpose.msra.mxu0 0.0
    %273 = vmatpush.xpose.msra.mxu0 0.0
    %274 = vmatpush.xpose.msra.mxu0 0.0
    %275 = vmatpush.xpose.msra.mxu0 0.0
    %276 = vmatpush.xpose.msra.mxu0 0.0
    %277 = vmatpush.xpose.msra.mxu0 0.0
    %278 = vmatpush.xpose.msra.mxu0 0.0
    %279 = vmatpush.xpose.msra.mxu0 0.0
    %280 = vmatpush.xpose.msra.mxu0 0.0
    %281 = vmatpush.xpose.msra.mxu0 0.0
    %282 = vmatpush.xpose.msra.mxu0 0.0
    %283 = vmatpush.xpose.msra.mxu0 %v223
    %284 = vmatmul.f32.gmra.mxu0 %v266
    %v285 = vpop.f32.mrf.mxu0
    %v286 = vadd.f32 0.0, %v285
    %287 = vdwg.mxu0
    %v288 = vperm.slane %v286, 0
    %v289 = vadd.f32 %v264, %v288
    %vm290 = vcmp.gt.f32.partialorder %v289, 0.0
    %v291 = vmul.f32 %v289, 0.2
    %v292 = vsel %vm290, %v289, %v291
    %v293 = vsel %vm99, %v292, -9e+15
    %v294 = vsel %vm170, %v293, -inf
    %295 = vmax.xlane.f32.xlu0 %v294
    %v296 = vpop.xlane.xlu0 %295
    %v297 = vsub.f32 %v293, %v296
    %v298 = vmul.f32 %v297, 1.442695
    %v299 = vpow.pop %v298
    %v300 = vsel %vm170, %v299, 0.0
    %301 = vadd.xlane.f32.xlu0 %v300
    %v302 = vpop.xlane.xlu0 %301
    %v303 = vrcp.pop %v302
    %v304 = vmul.f32 %v302, %v303
    %v305 = vsub.f32 1.0, %v304
    %v306 = vmul.f32 %v303, %v305
    %v307 = vadd.f32 %v303, %v306
    %vm308 = vweird.f32 %v302
    %vm309 = vweird.f32 %v303
    %vm310 = vmor %vm308, %vm309
    %v311 = vsel %vm310, %v303, %v307
    %v312 = vand.u32 2147483647, %v302
    %vm313 = vcmp.eq.f32.partialorder %v312, 8.507059e+37
    %v314 = vand.u32 %v302, 2147483648
    %v315 = vor.u32 1.1754944e-38, %v314
    %v316 = vsel %vm313, %v315, %v311
    %v317 = vmul.f32 %v299, %v316
    %v319 = vsel %vm170, %v317, 0
    %321 = vmatpush.msra.mxu0 0.0
    %322 = vmatpush.msra.mxu0 0.0
    %323 = vmatpush.msra.mxu0 0.0
    %324 = vmatpush.msra.mxu0 0.0
    %325 = vmatpush.msra.mxu0 0.0
    %326 = vmatpush.msra.mxu0 0.0
    %327 = vmatpush.msra.mxu0 0.0
    %328 = vmatpush.msra.mxu0 0.0
    %329 = vmatpush.msra.mxu0 0.0
    %330 = vmatpush.msra.mxu0 0.0
    %331 = vmatpush.msra.mxu0 0.0
    %332 = vmatpush.msra.mxu0 0.0
    %333 = vmatpush.msra.mxu0 0.0
    %334 = vmatpush.msra.mxu0 0.0
    %335 = vmatpush.msra.mxu0 0.0
    %336 = vmatpush.msra.mxu0 %v259
    %337 = vmatmul.f32.gmra.mxu0 %v319
    %v338 = vpop.f32.mrf.mxu0
    %v339 = vadd.f32 0.0, %v338
    %340 = vdwg.mxu0
    %vm341 = vcmp.gt.f32.partialorder %v339, 0.0
    %v342 = vmin.f32 %v339, 0.0
    %v343 = vmul.f32 %v342, 1.442695
    %v344 = vpow.pop %v343
    %v345 = vsub.f32 %v344, 1.0
    %v346 = vsel %vm341, %v339, %v345
    %347 = vmax.xlane.f32.xlu0 %v346
    %v348 = vpop.xlane.xlu0 %347
    %v349 = vsub.f32 %v346, %v348
    %v350 = vmul.f32 %v349, 1.442695
    %v351 = vpow.pop %v350
    %352 = vadd.xlane.f32.xlu0 %v351
    %v353 = vpop.xlane.xlu0 %352
    %v354 = vlog2.pop %v353
    %v355 = vmul.f32 %v354, 0.6931472
    %v356 = vsub.f32 %v349, %v355
    %v357 = vmul.f32 %v356, %v356
    %358 = vadd.xlane.f32.xlu0 %v357
    %v359 = vpop.xlane.xlu0 %358
    %v360 = vmax.f32 %v359, 1e-24
    %v361 = vrsqrt.pop %v360
    %v362 = vmul.f32 %v361, %v360
    %v363 = vmul.f32 %v362, %v361
    %v364 = vmul.f32 0.5, %v363
    %v365 = vsub.f32 1.5, %v364
    %v366 = vmul.f32 %v361, %v365
    %vm367 = vweird.f32 %v360
    %vm368 = vweird.f32 %v361
    %vm369 = vmor %vm367, %vm368
    %v370 = vsel %vm369, %v361, %v366
    %v371 = vmul.f32 %v356, %v370
    %372 = vst [vmem:[%s6] sm:$0xff] %v371
    %s373 = scalar_lea.vmem [#allocation6], 128
    %v374 = vld [vmem:[%s373] sm:$0xff]
    %v375 = vld [vmem:[%s373 + $0x8] sm:$0xff]
    %v376 = vld [vmem:[%s373 + $0x10] sm:$0xff]
    %v377 = vld [vmem:[%s373 + $0x18] sm:$0xff]
    %v378 = vld [vmem:[%s373 + $0x20] sm:$0xff]
    %v379 = vld [vmem:[%s373 + $0x28] sm:$0xff]
    %v380 = vld [vmem:[%s373 + $0x30] sm:$0xff]
    %v381 = vld [vmem:[%s373 + $0x38] sm:$0xff]
    %v382 = vld [vmem:[%s373 + $0x40] sm:$0xff]
    %v383 = vld [vmem:[%s373 + $0x48] sm:$0xff]
    %v384 = vld [vmem:[%s373 + $0x50] sm:$0xff]
    %v385 = vld [vmem:[%s373 + $0x58] sm:$0xff]
    %v386 = vld [vmem:[%s373 + $0x60] sm:$0xff]
    %v387 = vld [vmem:[%s373 + $0x68] sm:$0xff]
    %v388 = vld [vmem:[%s373 + $0x70] sm:$0xff]
    %v389 = vld [vmem:[%s373 + $0x78] sm:$0xff]
    %s390 = scalar_lea.vmem [#allocation7], 2
    %v391 = vld [vmem:[%s390] sm:$0x3]
    %392 = vmatpush.msra.mxu0 %v389
    %393 = vmatpush.msra.mxu0 %v388
    %394 = vmatpush.msra.mxu0 %v387
    %395 = vmatpush.msra.mxu0 %v386
    %396 = vmatpush.msra.mxu0 %v385
    %397 = vmatpush.msra.mxu0 %v384
    %398 = vmatpush.msra.mxu0 %v383
    %399 = vmatpush.msra.mxu0 %v382
    %400 = vmatpush.msra.mxu0 %v381
    %401 = vmatpush.msra.mxu0 %v380
    %402 = vmatpush.msra.mxu0 %v379
    %403 = vmatpush.msra.mxu0 %v378
    %404 = vmatpush.msra.mxu0 %v377
    %405 = vmatpush.msra.mxu0 %v376
    %406 = vmatpush.msra.mxu0 %v375
    %407 = vmatpush.msra.mxu0 %v374
    %408 = vmatmul.f32.gmra.mxu0 %v97
    %v409 = vpop.f32.mrf.mxu0
    %v410 = vadd.f32 0.0, %v409
    %411 = vdwg.mxu0
    %v412 = vperm.slane %v391, 0
    %v413 = vmul.f32 %v97, %v412
    %414 = vadd.xlane.f32.xlu0 %v413
    %v415 = vpop.xlane.xlu0 %414
    %v417 = vrot.slane %v391, 1
    %419 = vmatpush.xpose.msra.mxu0 0.0
    %420 = vmatpush.xpose.msra.mxu0 0.0
    %421 = vmatpush.xpose.msra.mxu0 0.0
    %422 = vmatpush.xpose.msra.mxu0 0.0
    %423 = vmatpush.xpose.msra.mxu0 0.0
    %424 = vmatpush.xpose.msra.mxu0 0.0
    %425 = vmatpush.xpose.msra.mxu0 0.0
    %426 = vmatpush.xpose.msra.mxu0 0.0
    %427 = vmatpush.xpose.msra.mxu0 0.0
    %428 = vmatpush.xpose.msra.mxu0 0.0
    %429 = vmatpush.xpose.msra.mxu0 0.0
    %430 = vmatpush.xpose.msra.mxu0 0.0
    %431 = vmatpush.xpose.msra.mxu0 0.0
    %432 = vmatpush.xpose.msra.mxu0 0.0
    %433 = vmatpush.xpose.msra.mxu0 0.0
    %434 = vmatpush.xpose.msra.mxu0 %v97
    %435 = vmatmul.f32.gmra.mxu0 %v417
    %v436 = vpop.f32.mrf.mxu0
    %v437 = vadd.f32 0.0, %v436
    %438 = vdwg.mxu0
    %v439 = vperm.slane %v437, 0
    %v440 = vadd.f32 %v415, %v439
    %vm441 = vcmp.gt.f32.partialorder %v440, 0.0
    %v442 = vmul.f32 %v440, 0.2
    %v443 = vsel %vm441, %v440, %v442
    %v444 = vsel %vm99, %v443, -9e+15
    %v445 = vsel %vm170, %v444, -inf
    %446 = vmax.xlane.f32.xlu0 %v445
    %v447 = vpop.xlane.xlu0 %446
    %v448 = vsub.f32 %v444, %v447
    %v449 = vmul.f32 %v448, 1.442695
    %v450 = vpow.pop %v449
    %v451 = vsel %vm170, %v450, 0.0
    %452 = vadd.xlane.f32.xlu0 %v451
    %v453 = vpop.xlane.xlu0 %452
    %v454 = vrcp.pop %v453
    %v455 = vmul.f32 %v453, %v454
    %v456 = vsub.f32 1.0, %v455
    %v457 = vmul.f32 %v454, %v456
    %v458 = vadd.f32 %v454, %v457
    %vm459 = vweird.f32 %v453
    %vm460 = vweird.f32 %v454
    %vm461 = vmor %vm459, %vm460
    %v462 = vsel %vm461, %v454, %v458
    %v463 = vand.u32 2147483647, %v453
    %vm464 = vcmp.eq.f32.partialorder %v463, 8.507059e+37
    %v465 = vand.u32 %v453, 2147483648
    %v466 = vor.u32 1.1754944e-38, %v465
    %v467 = vsel %vm464, %v466, %v462
    %v468 = vmul.f32 %v450, %v467
    %v470 = vsel %vm170, %v468, 0
    %472 = vmatpush.msra.mxu0 0.0
    %473 = vmatpush.msra.mxu0 0.0
    %474 = vmatpush.msra.mxu0 0.0
    %475 = vmatpush.msra.mxu0 0.0
    %476 = vmatpush.msra.mxu0 0.0
    %477 = vmatpush.msra.mxu0 0.0
    %478 = vmatpush.msra.mxu0 0.0
    %479 = vmatpush.msra.mxu0 0.0
    %480 = vmatpush.msra.mxu0 0.0
    %481 = vmatpush.msra.mxu0 0.0
    %482 = vmatpush.msra.mxu0 0.0
    %483 = vmatpush.msra.mxu0 0.0
    %484 = vmatpush.msra.mxu0 0.0
    %485 = vmatpush.msra.mxu0 0.0
    %486 = vmatpush.msra.mxu0 0.0
    %487 = vmatpush.msra.mxu0 %v410
    %488 = vmatmul.f32.gmra.mxu0 %v470
    %v489 = vpop.f32.mrf.mxu0
    %v490 = vadd.f32 0.0, %v489
    %491 = vdwg.mxu0
    %vm492 = vcmp.gt.f32.partialorder %v490, 0.0
    %v493 = vmin.f32 %v490, 0.0
    %v494 = vmul.f32 %v493, 1.442695
    %v495 = vpow.pop %v494
    %v496 = vsub.f32 %v495, 1.0
    %v497 = vsel %vm492, %v490, %v496
    %s498 = scalar_lea.vmem [#allocation9], 128
    %v499 = vld [vmem:[%s498] sm:$0xff]
    %v500 = vld [vmem:[%s498 + $0x8] sm:$0xff]
    %v501 = vld [vmem:[%s498 + $0x10] sm:$0xff]
    %v502 = vld [vmem:[%s498 + $0x18] sm:$0xff]
    %v503 = vld [vmem:[%s498 + $0x20] sm:$0xff]
    %v504 = vld [vmem:[%s498 + $0x28] sm:$0xff]
    %v505 = vld [vmem:[%s498 + $0x30] sm:$0xff]
    %v506 = vld [vmem:[%s498 + $0x38] sm:$0xff]
    %v507 = vld [vmem:[%s498 + $0x40] sm:$0xff]
    %v508 = vld [vmem:[%s498 + $0x48] sm:$0xff]
    %v509 = vld [vmem:[%s498 + $0x50] sm:$0xff]
    %v510 = vld [vmem:[%s498 + $0x58] sm:$0xff]
    %v511 = vld [vmem:[%s498 + $0x60] sm:$0xff]
    %v512 = vld [vmem:[%s498 + $0x68] sm:$0xff]
    %v513 = vld [vmem:[%s498 + $0x70] sm:$0xff]
    %v514 = vld [vmem:[%s498 + $0x78] sm:$0xff]
    %s515 = scalar_lea.vmem %s5, 2
    %v516 = vld [vmem:[%s515] sm:$0x3]
    %517 = vmatpush.msra.mxu0 %v514
    %518 = vmatpush.msra.mxu0 %v513
    %519 = vmatpush.msra.mxu0 %v512
    %520 = vmatpush.msra.mxu0 %v511
    %521 = vmatpush.msra.mxu0 %v510
    %522 = vmatpush.msra.mxu0 %v509
    %523 = vmatpush.msra.mxu0 %v508
    %524 = vmatpush.msra.mxu0 %v507
    %525 = vmatpush.msra.mxu0 %v506
    %526 = vmatpush.msra.mxu0 %v505
    %527 = vmatpush.msra.mxu0 %v504
    %528 = vmatpush.msra.mxu0 %v503
    %529 = vmatpush.msra.mxu0 %v502
    %530 = vmatpush.msra.mxu0 %v501
    %531 = vmatpush.msra.mxu0 %v500
    %532 = vmatpush.msra.mxu0 %v499
    %533 = vmatmul.f32.gmra.mxu0 %v497
    %v534 = vpop.f32.mrf.mxu0
    %v535 = vadd.f32 0.0, %v534
    %536 = vdwg.mxu0
    %v537 = vperm.slane %v516, 0
    %v538 = vmul.f32 %v497, %v537
    %539 = vadd.xlane.f32.xlu0 %v538
    %v540 = vpop.xlane.xlu0 %539
    %v542 = vrot.slane %v516, 1
    %544 = vmatpush.xpose.msra.mxu0 0.0
    %545 = vmatpush.xpose.msra.mxu0 0.0
    %546 = vmatpush.xpose.msra.mxu0 0.0
    %547 = vmatpush.xpose.msra.mxu0 0.0
    %548 = vmatpush.xpose.msra.mxu0 0.0
    %549 = vmatpush.xpose.msra.mxu0 0.0
    %550 = vmatpush.xpose.msra.mxu0 0.0
    %551 = vmatpush.xpose.msra.mxu0 0.0
    %552 = vmatpush.xpose.msra.mxu0 0.0
    %553 = vmatpush.xpose.msra.mxu0 0.0
    %554 = vmatpush.xpose.msra.mxu0 0.0
    %555 = vmatpush.xpose.msra.mxu0 0.0
    %556 = vmatpush.xpose.msra.mxu0 0.0
    %557 = vmatpush.xpose.msra.mxu0 0.0
    %558 = vmatpush.xpose.msra.mxu0 0.0
    %559 = vmatpush.xpose.msra.mxu0 %v497
    %560 = vmatmul.f32.gmra.mxu0 %v542
    %v561 = vpop.f32.mrf.mxu0
    %v562 = vadd.f32 0.0, %v561
    %563 = vdwg.mxu0
    %v564 = vperm.slane %v562, 0
    %v565 = vadd.f32 %v540, %v564
    %vm566 = vcmp.gt.f32.partialorder %v565, 0.0
    %v567 = vmul.f32 %v565, 0.2
    %v568 = vsel %vm566, %v565, %v567
    %v569 = vsel %vm99, %v568, -9e+15
    %v570 = vsel %vm170, %v569, -inf
    %571 = vmax.xlane.f32.xlu0 %v570
    %v572 = vpop.xlane.xlu0 %571
    %v573 = vsub.f32 %v569, %v572
    %v574 = vmul.f32 %v573, 1.442695
    %v575 = vpow.pop %v574
    %v576 = vsel %vm170, %v575, 0.0
    %577 = vadd.xlane.f32.xlu0 %v576
    %v578 = vpop.xlane.xlu0 %577
    %v579 = vrcp.pop %v578
    %v580 = vmul.f32 %v578, %v579
    %v581 = vsub.f32 1.0, %v580
    %v582 = vmul.f32 %v579, %v581
    %v583 = vadd.f32 %v579, %v582
    %vm584 = vweird.f32 %v578
    %vm585 = vweird.f32 %v579
    %vm586 = vmor %vm584, %vm585
    %v587 = vsel %vm586, %v579, %v583
    %v588 = vand.u32 2147483647, %v578
    %vm589 = vcmp.eq.f32.partialorder %v588, 8.507059e+37
    %v590 = vand.u32 %v578, 2147483648
    %v591 = vor.u32 1.1754944e-38, %v590
    %v592 = vsel %vm589, %v591, %v587
    %v593 = vmul.f32 %v575, %v592
    %v595 = vsel %vm170, %v593, 0
    %597 = vmatpush.msra.mxu0 0.0
    %598 = vmatpush.msra.mxu0 0.0
    %599 = vmatpush.msra.mxu0 0.0
    %600 = vmatpush.msra.mxu0 0.0
    %601 = vmatpush.msra.mxu0 0.0
    %602 = vmatpush.msra.mxu0 0.0
    %603 = vmatpush.msra.mxu0 0.0
    %604 = vmatpush.msra.mxu0 0.0
    %605 = vmatpush.msra.mxu0 0.0
    %606 = vmatpush.msra.mxu0 0.0
    %607 = vmatpush.msra.mxu0 0.0
    %608 = vmatpush.msra.mxu0 0.0
    %609 = vmatpush.msra.mxu0 0.0
    %610 = vmatpush.msra.mxu0 0.0
    %611 = vmatpush.msra.mxu0 0.0
    %612 = vmatpush.msra.mxu0 %v535
    %613 = vmatmul.f32.gmra.mxu0 %v595
    %v614 = vpop.f32.mrf.mxu0
    %v615 = vadd.f32 0.0, %v614
    %616 = vdwg.mxu0
    %vm617 = vcmp.gt.f32.partialorder %v615, 0.0
    %v618 = vmin.f32 %v615, 0.0
    %v619 = vmul.f32 %v618, 1.442695
    %v620 = vpow.pop %v619
    %v621 = vsub.f32 %v620, 1.0
    %v622 = vsel %vm617, %v615, %v621
    %623 = vmax.xlane.f32.xlu0 %v622
    %v624 = vpop.xlane.xlu0 %623
    %v625 = vsub.f32 %v622, %v624
    %v626 = vmul.f32 %v625, 1.442695
    %v627 = vpow.pop %v626
    %628 = vadd.xlane.f32.xlu0 %v627
    %v629 = vpop.xlane.xlu0 %628
    %v630 = vlog2.pop %v629
    %v631 = vmul.f32 %v630, 0.6931472
    %v632 = vsub.f32 %v625, %v631
    %v633 = vmul.f32 %v632, %v632
    %634 = vadd.xlane.f32.xlu0 %v633
    %v635 = vpop.xlane.xlu0 %634
    %v636 = vmax.f32 %v635, 1e-24
    %v637 = vrsqrt.pop %v636
    %v638 = vmul.f32 %v637, %v636
    %v639 = vmul.f32 %v638, %v637
    %v640 = vmul.f32 0.5, %v639
    %v641 = vsub.f32 1.5, %v640
    %v642 = vmul.f32 %v637, %v641
    %vm643 = vweird.f32 %v636
    %vm644 = vweird.f32 %v637
    %vm645 = vmor %vm643, %vm644
    %v646 = vsel %vm645, %v637, %v642
    %v647 = vmul.f32 %v632, %v646
    %s648 = scalar_lea.vmem %s6, 8
    %649 = vst [vmem:[%s648] sm:$0xff] %v647
    // Predicated region
    $region46: #{my_model_forward.1} parent=1 // pred_check
      _
    $region47: #{my_model_forward.1} parent=1 // pred_check_branch
      %651 = sbr.rel (0) target = $region49
    $region48: #{my_model_forward.1} parent=1 // pred_region
      _
    $region49: #{my_model_forward.1} parent=1 // pred_fallthru
      _
    // Predicated region
    $region50: #{my_model_forward.1} parent=1 // pred_check
      _
    $region51: #{my_model_forward.1} parent=1 // pred_check_branch
      %653 = sbr.rel (0) target = $region53
    $region52: #{my_model_forward.1} parent=1 // pred_region
      _
    $region53: #{my_model_forward.1} parent=1 // pred_fallthru
      _
    %654 = vsyncpa [#allocation3], 1
    %655 = vsyncpa [#allocation5], 1
    %656 = vsyncpa [#allocation8], 1

</llo_original>
